<compile_context>
chip_gen: v7x
topology: tpu7x:2x2x1
jax: 0.10.0
libtpu: 0.0.40
codegen_flags: <defaults>
</compile_context>

<pallas_src>
import math
import functools

import jax
import jax.numpy as jnp
from jax.experimental import pallas as pl
from jax.experimental.pallas import tpu as pltpu

LN10 = math.log(10.0)
LOG_PI = math.log(math.pi)
LOG_2 = math.log(2.0)
LOG_2PI = math.log(2.0 * math.pi)

# Fixed distribution parameters from the PyTorch module's __init__.
_CAUCHY_LOC, _CAUCHY_SCALE = 2.0, 1.5
_HALF_CAUCHY_SCALE = 0.5
_EXP_RATE = 1.5
_GEOM_P = 0.3
_GUMBEL_LOC, _GUMBEL_SCALE = 1.0, 2.0
_HALF_NORMAL_SCALE = 1.0
_GAMMA_CONC, _GAMMA_RATE = 1.0, 2.0
_NORMAL_LOC, _NORMAL_SCALE = 0.0, 2.0
_STUDENT_DF, _STUDENT_LOC, _STUDENT_SCALE = 2.0, 0.0, 1.0
_BETA_A, _BETA_B = 1.0, 3.0

LANE = 128
# Below this many elements, pallas_call launch overhead dominates -> let XLA
# fuse the plain jnp expression instead (override with use_pallas=True).
_PALLAS_MIN_ELEMS = 4096


def _log10prob_fn(type_dtb):
    """Return f(x) = ln(10) * log_prob(x), with all scalar constants folded.

    The kernel then only needs one final exp:  10**log_prob == exp(f(x)).
    Formulas match torch.distributions exactly (constant folding aside).
    """
    if type_dtb == "Cauchy":
        A = LN10 * (-LOG_PI - math.log(_CAUCHY_SCALE))
        inv_s = 1.0 / _CAUCHY_SCALE

        def f(x):
            z = (x - _CAUCHY_LOC) * inv_s
            return A - LN10 * jnp.log1p(z * z)
        return f
    if type_dtb == "HalfCauchy":
        A = LN10 * (LOG_2 - LOG_PI - math.log(_HALF_CAUCHY_SCALE))
        inv_s = 1.0 / _HALF_CAUCHY_SCALE

        def f(x):
            z = x * inv_s
            lp = A - LN10 * jnp.log1p(z * z)
            return jnp.where(x < 0.0, -jnp.inf, lp)
        return f
    if type_dtb == "Exponential":
        A = LN10 * math.log(_EXP_RATE)
        B = LN10 * _EXP_RATE

        def f(x):
            return A - B * x
        return f
    if type_dtb == "Geometric":
        A = LN10 * math.log(_GEOM_P)
        B = LN10 * math.log1p(-_GEOM_P)

        def f(x):
            return A + B * x
        return f
    if type_dtb == "Gumbel":
        A = LN10 * (-math.log(_GUMBEL_SCALE))
        inv_s = 1.0 / _GUMBEL_SCALE

        def f(x):
            z = (x - _GUMBEL_LOC) * inv_s
            return A - LN10 * (z + jnp.exp(-z))
        return f
    if type_dtb == "Gamma":
        # torch uses xlogy(conc-1, x): identically 0 since conc == 1.0
        A = LN10 * (_GAMMA_CONC * math.log(_GAMMA_RATE) - math.lgamma(_GAMMA_CONC))
        B = LN10 * _GAMMA_RATE

        def f(x):
            return A - B * x
        return f
    if type_dtb == "HalfNormal":
        A = LN10 * (LOG_2 - math.log(_HALF_NORMAL_SCALE) - 0.5 * LOG_2PI)
        B = LN10 * 0.5 / (_HALF_NORMAL_SCALE ** 2)

        def f(x):
            lp = A - B * x * x
            return jnp.where(x < 0.0, -jnp.inf, lp)
        return f
    if type_dtb == "Normal":
        A = LN10 * (-math.log(_NORMAL_SCALE) - 0.5 * LOG_2PI)
        B = LN10 * 0.5 / (_NORMAL_SCALE ** 2)

        def f(x):
            d = x - _NORMAL_LOC
            return A - B * d * d
        return f
    if type_dtb == "StudentT":
        A = LN10 * (math.lgamma((_STUDENT_DF + 1.0) / 2.0)
                    - math.lgamma(_STUDENT_DF / 2.0)
                    - 0.5 * math.log(_STUDENT_DF * math.pi)
                    - math.log(_STUDENT_SCALE))
        B = LN10 * 0.5 * (_STUDENT_DF + 1.0)
        inv_s = 1.0 / _STUDENT_SCALE
        inv_df = 1.0 / _STUDENT_DF

        def f(x):
            z = (x - _STUDENT_LOC) * inv_s
            return A - B * jnp.log1p(z * z * inv_df)
        return f
    if type_dtb == "Beta":
        # torch uses xlogy(a-1, x): identically 0 since a == 1.0
        A = LN10 * (math.lgamma(_BETA_A + _BETA_B)
                    - math.lgamma(_BETA_A) - math.lgamma(_BETA_B))
        B = LN10 * (_BETA_B - 1.0)

        def f(x):
            return A + B * jnp.log1p(-x)
        return f
    raise ValueError(f"unknown type_dtb: {type_dtb}")


def _pdf_kernel(x_ref, o_ref, *, log10_prob):
    # Cast inside the kernel (input travels HBM->VMEM in its native dtype).
    x = x_ref[...].astype(jnp.float32)
    # 10 ** log_prob == exp(ln(10) * log_prob); exp(-inf) -> 0 as expected.
    o_ref[...] = jnp.exp(log10_prob(x))


def _round_up(v, m):
    return ((v + m - 1) // m) * m


def calculating_param_pdf(x, type_dtb, use_pallas=None):
    """Pallas equivalent of Claculating_param_pdf(type_dtb)(x).

    Output is float32 (the distribution's compute dtype), matching the
    reference module's float result regardless of input dtype.
    """
    orig_shape = x.shape
    log10_prob = _log10prob_fn(type_dtb)
    n = int(math.prod(orig_shape)) if orig_shape else 1

    if use_pallas is None:
        use_pallas = n >= _PALLAS_MIN_ELEMS
    if not use_pallas or n == 0:
        # Tiny-input fast path: a fused XLA elementwise op beats kernel launch.
        return jnp.exp(log10_prob(x.astype(jnp.float32))).reshape(orig_shape)

    xf = x.reshape(-1)
    pad = (-n) % LANE
    if pad:
        # Pad only up to a multiple of 128 (0.5 is in every distribution's
        # support, so padded lanes never produce NaN); sliced off below.
        xf = jnp.concatenate([xf, jnp.full((pad,), 0.5, xf.dtype)])
    rows = (n + pad) // LANE
    x2 = xf.reshape(rows, LANE)

    # Sublane multiple depends on dtype packing (f32: 8, bf16/f16: 16, 8-bit: 32).
    itemsize = jnp.dtype(x.dtype).itemsize
    sub = max(8, 32 // max(itemsize, 1))
    # Big blocks for bandwidth (cap 1024 rows == 512 KiB f32), but split so the
    # grid has >= 2 steps whenever possible (v7x megacore sharding).
    tile_r = max(sub, min(1024, _round_up(pl.cdiv(rows, 2), sub)))
    grid = pl.cdiv(rows, tile_r)  # ragged last block handled by Pallas masking

    kernel = functools.partial(_pdf_kernel, log10_prob=log10_prob)

    out2 = pl.pallas_call(
        kernel,
        out_shape=jax.ShapeDtypeStruct((rows, LANE), jnp.float32),
        grid_spec=pl.GridSpec(
            grid=(grid,),
            in_specs=[pl.BlockSpec((tile_r, LANE), lambda i: (i, 0))],
            out_specs=pl.BlockSpec((tile_r, LANE), lambda i: (i, 0)),
        ),
        compiler_params=pltpu.CompilerParams(
            dimension_semantics=("parallel",)),
    )(x2)

    flat = out2.reshape(-1)
    if pad:
        flat = flat[:n]
    return flat.reshape(orig_shape)


def _reference(x, type_dtb):
    """Plain-JAX reference (unfolded torch.distributions formulas)."""
    xf = x.astype(jnp.float32)
    if type_dtb == "Cauchy":
        z = (xf - _CAUCHY_LOC) / _CAUCHY_SCALE
        lp = -LOG_PI - math.log(_CAUCHY_SCALE) - jnp.log1p(z * z)
    elif type_dtb == "HalfCauchy":
        z = xf / _HALF_CAUCHY_SCALE
        lp = LOG_2 - LOG_PI - math.log(_HALF_CAUCHY_SCALE) - jnp.log1p(z * z)
        lp = jnp.where(xf < 0.0, -jnp.inf, lp)
    elif type_dtb == "Exponential":
        lp = math.log(_EXP_RATE) - _EXP_RATE * xf
    elif type_dtb == "Geometric":
        lp = xf * math.log1p(-_GEOM_P) + math.log(_GEOM_P)
    elif type_dtb == "Gumbel":
        z = (xf - _GUMBEL_LOC) / _GUMBEL_SCALE
        lp = -(z + jnp.exp(-z)) - math.log(_GUMBEL_SCALE)
    elif type_dtb == "Gamma":
        lp = (_GAMMA_CONC * math.log(_GAMMA_RATE) - math.lgamma(_GAMMA_CONC)
              - _GAMMA_RATE * xf)
    elif type_dtb == "HalfNormal":
        z = xf / _HALF_NORMAL_SCALE
        lp = LOG_2 - math.log(_HALF_NORMAL_SCALE) - 0.5 * LOG_2PI - 0.5 * z * z
        lp = jnp.where(xf < 0.0, -jnp.inf, lp)
    elif type_dtb == "Normal":
        z = (xf - _NORMAL_LOC) / _NORMAL_SCALE
        lp = -math.log(_NORMAL_SCALE) - 0.5 * LOG_2PI - 0.5 * z * z
    elif type_dtb == "StudentT":
        z = (xf - _STUDENT_LOC) / _STUDENT_SCALE
        lp = (math.lgamma((_STUDENT_DF + 1.0) / 2.0)
              - math.lgamma(_STUDENT_DF / 2.0)
              - 0.5 * math.log(_STUDENT_DF * math.pi)
              - math.log(_STUDENT_SCALE)
              - 0.5 * (_STUDENT_DF + 1.0) * jnp.log1p(z * z / _STUDENT_DF))
    elif type_dtb == "Beta":
        lp = ((_BETA_B - 1.0) * jnp.log1p(-xf)
              + math.lgamma(_BETA_A + _BETA_B)
              - math.lgamma(_BETA_A) - math.lgamma(_BETA_B))
    else:
        raise ValueError(type_dtb)
    return 10.0 ** lp


if __name__ == "__main__":
    key = jax.random.PRNGKey(0)
    # NCHW-like input, as the module would receive feature maps.
    x = jax.random.normal(key, (2, 4, 16, 16), dtype=jnp.float32)
    x01 = jax.nn.sigmoid(x)  # constrained-support distributions need (0, 1)

    # Keep the number of distinct Pallas compiles small: one unconstrained,
    # one constrained, one ragged-shape, one bf16-input case.
    out = jax.block_until_ready(calculating_param_pdf(x, "Normal", use_pallas=True))
    ref = _reference(x, "Normal")
    assert out.shape == x.shape and out.dtype == jnp.float32
    assert jnp.allclose(out, ref, rtol=1e-4, atol=1e-6)

    out = jax.block_until_ready(calculating_param_pdf(x01, "Beta", use_pallas=True))
    assert jnp.allclose(out, _reference(x01, "Beta"), rtol=1e-4, atol=1e-6)

    # Remaining distributions go through the (identical-formula) fused XLA
    # path, verifying the folded-constant forms without extra kernel compiles.
    for dtb in ["Cauchy", "Gumbel", "StudentT"]:
        o = calculating_param_pdf(x, dtb, use_pallas=False)
        assert jnp.allclose(o, _reference(x, dtb), rtol=1e-4, atol=1e-6), dtb
    for dtb in ["HalfCauchy", "Exponential", "Geometric", "Gamma", "HalfNormal"]:
        o = calculating_param_pdf(x01, dtb, use_pallas=False)
        assert jnp.allclose(o, _reference(x01, dtb), rtol=1e-4, atol=1e-6), dtb

    # Ragged case: exercises lane padding, cdiv grid with masked last block,
    # and >= 2 grid steps.
    xr = jax.random.normal(jax.random.PRNGKey(1), (3, 5, 33, 67), dtype=jnp.float32)
    out = jax.block_until_ready(calculating_param_pdf(xr, "StudentT", use_pallas=True))
    assert jnp.allclose(out, _reference(xr, "StudentT"), rtol=1e-4, atol=1e-6)

    # bf16 input: cast happens inside the kernel; output stays float32.
    xb = x.astype(jnp.bfloat16)
    out = jax.block_until_ready(calculating_param_pdf(xb, "Normal", use_pallas=True))
    assert out.dtype == jnp.float32
    assert jnp.allclose(out, _reference(xb, "Normal"), rtol=1e-4, atol=1e-6)

    print("KERNEL_OK")
</pallas_src>

<mosaic_0001>
module attributes {stable_mosaic.version = 11 : i64} {
  func.func @_pdf_kernel(%arg0: i32, %arg1: memref<8x128xf32, #tpu.memory_space<vmem>>, %arg2: memref<8x128xf32, #tpu.memory_space<vmem>>) attributes {dimension_semantics = [#tpu.dimension_semantics<parallel>], iteration_bounds = array<i64: 2>, scalar_prefetch = 0 : i64, scratch_operands = 0 : i64, tpu.core_type = #tpu.core_type<tc>, window_params = [{transform_indices = @transform_0, window_bounds = array<i64: 8, 128>}, {transform_indices = @transform_1, window_bounds = array<i64: 8, 128>}]} {
    %c0 = arith.constant 0 : index
    %c0_0 = arith.constant 0 : index
    %0 = vector.load %arg1[%c0, %c0_0] : memref<8x128xf32, #tpu.memory_space<vmem>>, vector<8x128xf32>
    %cst = arith.constant 0.000000e+00 : f32
    %1 = vector.broadcast %cst : f32 to vector<8x128xf32>
    %2 = arith.subf %0, %1 : vector<8x128xf32>
    %cst_1 = arith.constant 0.287823141 : f32
    %3 = vector.broadcast %cst_1 : f32 to vector<8x128xf32>
    %4 = arith.mulf %3, %2 : vector<8x128xf32>
    %5 = arith.mulf %4, %2 : vector<8x128xf32>
    %cst_2 = arith.constant -3.71196461 : f32
    %6 = vector.broadcast %cst_2 : f32 to vector<8x128xf32>
    %7 = arith.subf %6, %5 : vector<8x128xf32>
    %8 = math.exp %7 : vector<8x128xf32>
    %c0_3 = arith.constant 0 : index
    %c0_4 = arith.constant 0 : index
    %9 = vector.load %arg2[%c0_3, %c0_4] : memref<8x128xf32, #tpu.memory_space<vmem>>, vector<8x128xf32>
    tpu.vector_store %arg2[%c0_3, %c0_4], %8 {strides = array<i32>} : memref<8x128xf32, #tpu.memory_space<vmem>>, vector<8x128xf32>,
    return
  }
  func.func @transform_0(%arg0: i32) -> (i32, i32) {
    %c0_i32 = arith.constant 0 : i32
    %c0_i32_0 = arith.constant 0 : i32
    return %arg0, %c0_i32 : i32, i32
  }
  func.func @transform_1(%arg0: i32) -> (i32, i32) {
    %c0_i32 = arith.constant 0 : i32
    %c0_i32_0 = arith.constant 0 : i32
    return %arg0, %c0_i32 : i32, i32
  }
}

</mosaic_0001>

<llo_original>
// kernel: tpu_custom_call.1
$region0: #{tpu_custom_call.1}
  #allocation0 [shape = 'u32[]', space=smem, size = 0x4, offset = 0x4, fixed_abs, tag = 'smem constant byte address 0x4 - core index']
  #allocation1 [shape = 'u32[144,128]{1,0:T(1,128)}', space=vmem, size = 0x12000, scoped, tag = 'internal scratch']
  %s0 = inlined_call_operand.hbm [shape: f32[16,128], index: 0, kind: input, shape index: {}]
  %s1 = inlined_call_operand.hbm [shape: f32[16,128], index: 1, kind: output, shape index: {}]
  %s2 = sld [smem:[#allocation0]]
  $region41: #{tpu_custom_call.1} parent=0
    _
  %s4 = ssub.s32 1, %s2
  %s5 = scalar_select 0, %s4, %s2
  $region1: #{tpu_custom_call.1} parent=0
    #allocation2 [shape = 'u8[8192]{0}', space=vmem, size = 0x2000, scoped, tag = 'input window, operand 0']
    #allocation3 [shape = 's32[2]{0}', space=sflag, size = 0x8, scoped, tag = 'scoped memory for tpu_custom_call.1']
    #allocation4 [shape = 's32[2]{0}', space=sflag, size = 0x8, scoped, tag = 'scoped memory for tpu_custom_call.1']
    #allocation5 [shape = 'u8[8192]{0}', space=vmem, size = 0x2000, scoped, tag = 'output window, operand 0']
    %6 = vsyncpa [#allocation3], 0
    %s7 = scalar_lea.sflag [#allocation3], 1
    %8 = vsyncpa %s7, 0
    %9 = vsyncpa [#allocation4], 0
    %s10 = scalar_lea.sflag [#allocation4], 1
    %11 = vsyncpa %s10, 0
    loop: start=0, step=1, limit=4
    $region2: #{tpu_custom_call.1} parent=1 // loop_pre_header
      _
    $region3: #{tpu_custom_call.1} parent=1 // loop_header
      %s13 = sphi 0, %s17
      %p14 = scmp.ge.s32.totalorder %s13, 4
      %s23 = sphi 0, %s25
      %s26 = sphi 0, %s23
      %s27 = sphi 0, %s26
      %s43 = sphi 0, %s27
      %s49 = sphi 0, %s51
      %s52 = sphi 0, %s49
      %s53 = sphi 0, %s52
      %s69 = sphi 0, %s53
    $region4: #{tpu_custom_call.1} parent=1 // loop_header_branch
      %16 = sbr.rel (%p14) target = $region8
    $region5: #{tpu_custom_call.1} parent=1 // loop_body
      %s18 = ssub.s32 %s13, 1
      %s19 = ssub.s32 %s13, 2
      %s20 = sadd.s32 %s13, 1
      %s21 = ssub.s32 %s13, %s20
      %p22 = scmp.eq.s32.totalorder %s21, 0
      %s24 = sadd.s32 %s23, 1
      %s25 = scalar_select %p22, %s23, %s24
      %p28 = pneg %p22
      %p29 = scmp.eq.s32.totalorder %s13, 1
      %p30 = por %p28, %p29
      %p31 = scmp.ne.s32.totalorder %s23, %s26
      %p32 = scmp.eq.s32.totalorder %s13, 0
      %p33 = por %p31, %p32
      %p34 = scmp.ne.s32.totalorder %s23, %s26
      %p35 = scmp.eq.s32.totalorder %s18, 1
      %p36 = por %p34, %p35
      %p37 = scmp.ne.s32.totalorder %s26, %s27
      %p38 = scmp.eq.s32.totalorder %s18, 0
      %p39 = por %p37, %p38
      %p40 = scmp.ne.s32.totalorder %s26, %s27
      %p41 = scmp.eq.s32.totalorder %s19, 1
      %p42 = por %p40, %p41
      %p44 = scmp.ne.s32.totalorder %s27, %s43
      %p45 = scmp.eq.s32.totalorder %s19, 0
      %p46 = por %p44, %p45
      %s47 = ssub.s32 %s13, %s20
      %p48 = scmp.eq.s32.totalorder %s47, 0
      %s50 = sadd.s32 %s49, 1
      %s51 = scalar_select %p48, %s49, %s50
      %p54 = pneg %p48
      %p55 = scmp.eq.s32.totalorder %s13, 1
      %p56 = por %p54, %p55
      %p57 = scmp.ne.s32.totalorder %s49, %s52
      %p58 = scmp.eq.s32.totalorder %s13, 0
      %p59 = por %p57, %p58
      %p60 = scmp.ne.s32.totalorder %s49, %s52
      %p61 = scmp.eq.s32.totalorder %s18, 1
      %p62 = por %p60, %p61
      %p63 = scmp.ne.s32.totalorder %s52, %s53
      %p64 = scmp.eq.s32.totalorder %s18, 0
      %p65 = por %p63, %p64
      %p66 = scmp.ne.s32.totalorder %s52, %s53
      %p67 = scmp.eq.s32.totalorder %s19, 1
      %p68 = por %p66, %p67
      %p70 = scmp.ne.s32.totalorder %s53, %s69
      %p71 = scmp.eq.s32.totalorder %s19, 0
      %p72 = por %p70, %p71
      %p73 = scmp.le.s32.totalorder 1, %s13
      %p74 = scmp.lt.s32.totalorder %s13, 3
      %p75 = pnand %p73, %p74
      %p76 = pneg %p75
      // Predicated region
      $region9: #{tpu_custom_call.1} parent=5 // pred_check
        _
      $region10: #{tpu_custom_call.1} parent=5 // pred_check_branch
        %78 = sbr.rel (%p75) target = $region12
      $region11: #{tpu_custom_call.1} parent=5 // pred_region
        %s79 = ssub.s32 %s13, 1
      $region12: #{tpu_custom_call.1} parent=5 // pred_fallthru
        _
      %p80 = scmp.lt.s32.totalorder %s13, 2
      // Predicated region
      $region13: #{tpu_custom_call.1} parent=5 // pred_check
        %p81 = pneg %p80
      $region14: #{tpu_custom_call.1} parent=5 // pred_check_branch
        %83 = sbr.rel (%p81) target = $region16
      $region15: #{tpu_custom_call.1} parent=5 // pred_region
        // Predicated region
        $region17: #{tpu_custom_call.1} parent=15 // pred_check
          %p84 = pneg %p33
        $region18: #{tpu_custom_call.1} parent=15 // pred_check_branch
          %86 = sbr.rel (%p84) target = $region20
        $region19: #{tpu_custom_call.1} parent=15 // pred_region
          %s87 = sand.u32 %s23, 1
          %s88 = scalar_lea.sflag [#allocation3], %s87
          %s89 = sand.u32 %s23, 1
          %s90 = smul.addr %s89, 8
          %s91 = scalar_lea.vmem [#allocation2], %s90
          %s93 = ssub.s32 128, 128
          %94 = vsyncadd %s88, %s93
          %s95 = smul.addr %s13, 128
          %s96 = scalar_lea.hbm %s0, %s95
          %s98 = sshll.u32 %s91, 4
          %s99 = int_to_ptr.vmem [resolvable:$true] %s98
          %101 = dma.hbm_to_vmem [thread:$0]  %s96, 128, %s99, %s88
        $region20: #{tpu_custom_call.1} parent=15 // pred_fallthru
          _
      $region16: #{tpu_custom_call.1} parent=5 // pred_fallthru
        _
      %p102 = scmp.le.s32.totalorder 1, %s13
      %p103 = scmp.lt.s32.totalorder %s13, 3
      %p104 = pnand %p102, %p103
      %p105 = pneg %p104
      // Predicated region
      $region21: #{tpu_custom_call.1} parent=5 // pred_check
        _
      $region22: #{tpu_custom_call.1} parent=5 // pred_check_branch
        %107 = sbr.rel (%p104) target = $region24
      $region23: #{tpu_custom_call.1} parent=5 // pred_region
        %s108 = ssub.s32 %s13, 1
        %s109 = sand.u32 %s26, 1
        %s110 = scalar_lea.sflag [#allocation3], %s109
        %s111 = sand.u32 %s26, 1
        %s112 = smul.addr %s111, 8
        %s113 = scalar_lea.vmem [#allocation2], %s112
        // Predicated region
        $region25: #{tpu_custom_call.1} parent=23 // pred_check
          %p114 = pneg %p39
        $region26: #{tpu_custom_call.1} parent=23 // pred_check_branch
          %116 = sbr.rel (%p114) target = $region28
        $region27: #{tpu_custom_call.1} parent=23 // pred_region
          %117 = dma.done %s110, 128
        $region28: #{tpu_custom_call.1} parent=23 // pred_fallthru
          _
        %s118 = sand.u32 %s26, 1
        %s119 = scalar_lea.sflag [#allocation3], %s118
        %s120 = sand.u32 %s26, 1
        %s121 = smul.addr %s120, 8
        %s122 = scalar_lea.vmem [#allocation2], %s121
        %p123 = pneg %p39
        %p124 = pneg %p36
        %p125 = pneg %p65
        %p126 = pneg %p62
        %s127 = sand.u32 %s52, 1
        %s128 = scalar_lea.sflag [#allocation4], %s127
        %s129 = sand.u32 %s52, 1
        %s130 = smul.addr %s129, 8
        %s131 = scalar_lea.vmem [#allocation5], %s130
        %v132 = vld [vmem:[%s113] sm:$0xff]
        %v133 = vmul.f32 %v132, 0.28782314
        %v134 = vmul.f32 %v133, %v132
        %v135 = vsub.f32 -3.7119646, %v134
        %v136 = vmul.f32 %v135, 1.442695
        %v137 = vpow.pop %v136
        %138 = vst [vmem:[%s131] sm:$0xff] %v137
        %s139 = sand.u32 %s52, 1
        %s140 = scalar_lea.sflag [#allocation4], %s139
        %s141 = sand.u32 %s52, 1
        %s142 = smul.addr %s141, 8
        %s143 = scalar_lea.vmem [#allocation5], %s142
        // Predicated region
        $region29: #{tpu_custom_call.1} parent=23 // pred_check
          %p144 = pneg %p62
        $region30: #{tpu_custom_call.1} parent=23 // pred_check_branch
          %146 = sbr.rel (%p144) target = $region32
        $region31: #{tpu_custom_call.1} parent=23 // pred_region
          %s148 = ssub.s32 128, 128
          %149 = vsyncadd %s140, %s148
          %s150 = smul.addr %s18, 128
          %s151 = scalar_lea.hbm %s1, %s150
          %s153 = sshll.u32 %s143, 4
          %s154 = int_to_ptr.vmem [resolvable:$true] %s153
          %156 = dma.vmem_to_hbm [thread:$0]  %s154, 128, %s151, %s140
        $region32: #{tpu_custom_call.1} parent=23 // pred_fallthru
          _
      $region24: #{tpu_custom_call.1} parent=5 // pred_fallthru
        _
      %p157 = scmp.le.s32.totalorder 2, %s13
      // Predicated region
      $region33: #{tpu_custom_call.1} parent=5 // pred_check
        %p158 = pneg %p157
      $region34: #{tpu_custom_call.1} parent=5 // pred_check_branch
        %160 = sbr.rel (%p158) target = $region36
      $region35: #{tpu_custom_call.1} parent=5 // pred_region
        %s161 = ssub.s32 %s13, 2
        // Predicated region
        $region37: #{tpu_custom_call.1} parent=35 // pred_check
          %p162 = pneg %p68
        $region38: #{tpu_custom_call.1} parent=35 // pred_check_branch
          %164 = sbr.rel (%p162) target = $region40
        $region39: #{tpu_custom_call.1} parent=35 // pred_region
          %s165 = sand.u32 %s53, 1
          %s166 = scalar_lea.sflag [#allocation4], %s165
          %s167 = sand.u32 %s53, 1
          %s168 = smul.addr %s167, 8
          %s169 = scalar_lea.vmem [#allocation5], %s168
          %170 = dma.done %s166, 128
        $region40: #{tpu_custom_call.1} parent=35 // pred_fallthru
          _
      $region36: #{tpu_custom_call.1} parent=5 // pred_fallthru
        _
    $region6: #{tpu_custom_call.1} parent=1 // loop_footer
      %s17 = sadd.s32 1, %s13
    $region7: #{tpu_custom_call.1} parent=1 // loop_footer_branch
      %12 = sbr.rel target = $region3
    $region8: #{tpu_custom_call.1} parent=1 // loop_exit
      _
    %171 = vsyncpa [#allocation3], 1
    %s172 = scalar_lea.sflag [#allocation3], 1
    %173 = vsyncpa %s172, 1
    %174 = vsyncpa [#allocation4], 1
    %s175 = scalar_lea.sflag [#allocation4], 1
    %176 = vsyncpa %s175, 1

</llo_original>
